<compile_context>
chip_gen: v7x
topology: tpu7x:2x2x1
jax: 0.10.0
libtpu: 0.0.40
codegen_flags: <defaults>
</compile_context>

<pallas_src>
import functools
import math

import jax
import jax.numpy as jnp
from jax.experimental import pallas as pl
from jax.experimental.pallas import tpu as pltpu


# ---------------------------------------------------------------------------
# Tiling helper
# ---------------------------------------------------------------------------

def _pick_tile(dim, pref, align):
    """Largest tile <= pref that divides `dim` and is a multiple of `align`,
    falling back to the full dimension (always legal for TPU BlockSpecs)."""
    if dim <= pref or dim % align != 0:
        return dim
    t = (pref // align) * align
    while t >= align:
        if dim % t == 0:
            return t
        t -= align
    return dim


# ---------------------------------------------------------------------------
# Tiled linear (GEMM + bias) kernel
# ---------------------------------------------------------------------------

def _matmul_bias_kernel(x_ref, w_ref, b_ref, o_ref, acc_ref):
    """o = x @ W + b, accumulated over the K grid axis in f32 scratch."""
    k = pl.program_id(2)

    @pl.when(k == 0)
    def _():
        acc_ref[...] = jnp.zeros(acc_ref.shape, acc_ref.dtype)

    acc_ref[...] += jnp.dot(x_ref[...], w_ref[...],
                            preferred_element_type=jnp.float32)

    @pl.when(k == pl.num_programs(2) - 1)
    def _():
        o_ref[...] = (acc_ref[...] + b_ref[...].astype(jnp.float32)
                      ).astype(o_ref.dtype)


def linear_pallas(x2d, w, b, *, tm_pref=512, tn_pref=512, tk_pref=512):
    """x2d: (M, K) ; w: (K, N) ; b: (N,) -> x2d @ w + b (tiled, pipelined)."""
    M, K = x2d.shape
    N = w.shape[1]
    tm = _pick_tile(M, tm_pref, 8)
    tn = _pick_tile(N, tn_pref, 128)
    tk = _pick_tile(K, tk_pref, 128)
    b2d = b.reshape(1, N)
    return pl.pallas_call(
        _matmul_bias_kernel,
        out_shape=jax.ShapeDtypeStruct((M, N), x2d.dtype),
        grid_spec=pltpu.PrefetchScalarGridSpec(
            num_scalar_prefetch=0,
            grid=(M // tm, N // tn, K // tk),
            in_specs=[
                pl.BlockSpec((tm, tk), lambda i, j, k: (i, k)),
                pl.BlockSpec((tk, tn), lambda i, j, k: (k, j)),
                pl.BlockSpec((1, tn), lambda i, j, k: (0, j)),
            ],
            out_specs=pl.BlockSpec((tm, tn), lambda i, j, k: (i, j)),
            scratch_shapes=[pltpu.VMEM((tm, tn), jnp.float32)],
        ),
        compiler_params=pltpu.CompilerParams(
            dimension_semantics=("parallel", "parallel", "arbitrary")),
    )(x2d, w, b2d)


# ---------------------------------------------------------------------------
# Flash-style attention kernel (online softmax over KV tiles)
# ---------------------------------------------------------------------------

def _flash_attn_kernel(q_ref, k_ref, v_ref, o_ref, m_sc, l_sc, acc_sc, *,
                       scale):
    """One (batch*head, q-tile) row; grid axis 2 iterates over KV tiles."""
    kv = pl.program_id(2)

    @pl.when(kv == 0)
    def _():
        m_sc[...] = jnp.full(m_sc.shape, -jnp.inf, m_sc.dtype)
        l_sc[...] = jnp.zeros(l_sc.shape, l_sc.dtype)
        acc_sc[...] = jnp.zeros(acc_sc.shape, acc_sc.dtype)

    # Fold 1/sqrt(d_k) into q (tq*d_k multiplies instead of tq*tkv);
    # keep matmul inputs in their native dtype, accumulate in f32 on the MXU.
    q = q_ref[...] * scale                                          # (tq, d_k)
    s = jax.lax.dot_general(q, k_ref[...], (((1,), (1,)), ((), ())),
                            preferred_element_type=jnp.float32)     # (tq, tkv)

    m_prev = m_sc[...]
    m_new = jnp.maximum(m_prev, jnp.max(s, axis=-1, keepdims=True))
    alpha = jnp.exp(m_prev - m_new)
    p = jnp.exp(s - m_new)                                          # (tq, tkv)
    l_sc[...] = alpha * l_sc[...] + jnp.sum(p, axis=-1, keepdims=True)
    acc_sc[...] = alpha * acc_sc[...] + jnp.dot(
        p.astype(v_ref.dtype), v_ref[...],
        preferred_element_type=jnp.float32)                         # (tq, d_k)
    m_sc[...] = m_new

    @pl.when(kv == pl.num_programs(2) - 1)
    def _():
        inv_l = pl.reciprocal(l_sc[...], approx=True)
        o_ref[...] = (acc_sc[...] * inv_l).astype(o_ref.dtype)


def flash_attention_pallas(q, k, v, *, tq_pref=256, tkv_pref=256):
    """q, k, v: (B*H, S, d_k) -> softmax(q k^T / sqrt(d_k)) v per leading dim.

    TODO(synk): masked_fill path (mask != None) not implemented.
    TODO(synk): training-mode dropout on attention probabilities not implemented.
    """
    BH, S, d_k = q.shape
    tq = _pick_tile(S, tq_pref, 8)
    tkv = _pick_tile(S, tkv_pref, 8)
    kernel = functools.partial(_flash_attn_kernel, scale=1.0 / math.sqrt(d_k))

    q_spec = pl.BlockSpec((pl.Squeezed(), tq, d_k),
                          lambda bh, qi, ki: (bh, qi, 0))
    kv_spec = pl.BlockSpec((pl.Squeezed(), tkv, d_k),
                           lambda bh, qi, ki: (bh, ki, 0))

    return pl.pallas_call(
        kernel,
        out_shape=jax.ShapeDtypeStruct((BH, S, d_k), q.dtype),
        grid_spec=pltpu.PrefetchScalarGridSpec(
            num_scalar_prefetch=0,
            grid=(BH, S // tq, S // tkv),
            in_specs=[q_spec, kv_spec, kv_spec],
            out_specs=q_spec,
            scratch_shapes=[
                pltpu.VMEM((tq, 1), jnp.float32),     # running max
                pltpu.VMEM((tq, 1), jnp.float32),     # running sum
                pltpu.VMEM((tq, d_k), jnp.float32),   # output accumulator
            ],
        ),
        compiler_params=pltpu.CompilerParams(
            dimension_semantics=("parallel", "parallel", "arbitrary")),
    )(q, k, v)


# ---------------------------------------------------------------------------
# Module wrapper
# ---------------------------------------------------------------------------

class MultiHeadedAttentionPallas:
    """JAX/Pallas equivalent of the PyTorch MultiHeadedAttention module."""

    def __init__(self, h, d_model, dropout, key):
        assert d_model % h == 0
        self.h = h
        self.d_k = d_model // h
        self.d_model = d_model
        self.dropout_p = dropout  # identity in eval mode

        # 4 linear layers (q, k, v, out), each d_model -> d_model with bias.
        # Weights stored as (in, out) so the kernel computes x @ W + b.
        bound = 1.0 / math.sqrt(d_model)
        keys = jax.random.split(key, 8)
        self.weights = []
        self.biases = []
        for i in range(4):
            w = jax.random.uniform(keys[2 * i], (d_model, d_model),
                                   minval=-bound, maxval=bound,
                                   dtype=jnp.float32)
            b = jax.random.uniform(keys[2 * i + 1], (d_model,),
                                   minval=-bound, maxval=bound,
                                   dtype=jnp.float32)
            self.weights.append(w)
            self.biases.append(b)

        # Fused QKV projection weight/bias: (d_model, 3*d_model), order [q|k|v].
        self.w_qkv = jnp.concatenate(self.weights[:3], axis=1)
        self.b_qkv = jnp.concatenate(self.biases[:3], axis=0)
        self.w_out = self.weights[3]
        self.b_out = self.biases[3]

    def _project_qkv(self, query, key, value, B, S, D):
        if (query is key) and (key is value):
            # Self-attention: one fused GEMM reads the activation once.
            return linear_pallas(query.reshape(B * S, D), self.w_qkv,
                                 self.b_qkv)
        # General (cross-attention) path: three tiled projection GEMMs.
        parts = [linear_pallas(x.reshape(B * S, D), w, b)
                 for x, w, b in zip((query, key, value),
                                    self.weights[:3], self.biases[:3])]
        return jnp.concatenate(parts, axis=1)                   # (B*S, 3*D)

    def __call__(self, query, key, value, mask=None):
        # TODO(synk): masked_fill path for mask != None not implemented.
        B, S, D = query.shape
        h, d_k = self.h, self.d_k

        qkv = self._project_qkv(query, key, value, B, S, D)     # (B*S, 3*D)
        # Head split / layout: done in XLA (cheap) — BlockSpec cannot express a
        # d_k-wide last-dim block unless d_k is 128-aligned or the full dim.
        qkv = qkv.reshape(B, S, 3, h, d_k).transpose(2, 0, 3, 1, 4)
        qkv = qkv.reshape(3, B * h, S, d_k)
        q, k, v = qkv[0], qkv[1], qkv[2]                        # (B*H, S, d_k)

        ctx = flash_attention_pallas(q, k, v)                   # (B*H, S, d_k)

        ctx = ctx.reshape(B, h, S, d_k).transpose(0, 2, 1, 3).reshape(B * S, D)
        out = linear_pallas(ctx, self.w_out, self.b_out)
        return out.reshape(B, S, D)


# ---------------------------------------------------------------------------
# Pure-JAX reference for correctness check
# ---------------------------------------------------------------------------

def reference_forward(mha, query, key, value):
    B, S, D = query.shape
    h, d_k = mha.h, mha.d_k
    proj = []
    for x, w, b in zip((query, key, value), mha.weights[:3], mha.biases[:3]):
        y = x.reshape(B * S, D) @ w + b
        proj.append(y.reshape(B, S, h, d_k).transpose(0, 2, 1, 3))
    q, k, v = proj
    scores = jnp.einsum("bhqd,bhkd->bhqk", q, k) / math.sqrt(d_k)
    p = jax.nn.softmax(scores, axis=-1)
    ctx = jnp.einsum("bhqk,bhkd->bhqd", p, v)
    ctx = ctx.transpose(0, 2, 1, 3).reshape(B * S, D)
    out = ctx @ mha.weights[3] + mha.biases[3]
    return out.reshape(B, S, D)


# ---------------------------------------------------------------------------
# Main
# ---------------------------------------------------------------------------

if __name__ == "__main__":
    B, S, D, H = 2, 8, 32, 4   # batch, seq, d_model, heads (d_k = 8)
    root = jax.random.PRNGKey(0)
    k_params, k_q, k_k, k_v = jax.random.split(root, 4)

    mha = MultiHeadedAttentionPallas(h=H, d_model=D, dropout=0.1, key=k_params)

    query = jax.random.normal(k_q, (B, S, D), dtype=jnp.float32)
    key_in = jax.random.normal(k_k, (B, S, D), dtype=jnp.float32)
    value = jax.random.normal(k_v, (B, S, D), dtype=jnp.float32)

    # Tolerance accounts for the EUP approximate reciprocal in the softmax
    # normalization (output values are O(1)).
    ATOL = RTOL = 1e-2

    # Cross-attention path (separate projection GEMMs).
    out = jax.block_until_ready(mha(query, key_in, value))
    ref = reference_forward(mha, query, key_in, value)
    assert out.shape == (B, S, D), out.shape
    assert jnp.allclose(out, ref, atol=ATOL, rtol=RTOL), \
        float(jnp.max(jnp.abs(out - ref)))

    # Self-attention path (fused QKV GEMM).
    out_sa = jax.block_until_ready(mha(query, query, query))
    ref_sa = reference_forward(mha, query, query, query)
    assert jnp.allclose(out_sa, ref_sa, atol=ATOL, rtol=RTOL), \
        float(jnp.max(jnp.abs(out_sa - ref_sa)))

    print("KERNEL_OK")
</pallas_src>

<mosaic_0001>
module attributes {stable_mosaic.version = 11 : i64} {
  func.func @_matmul_bias_kernel(%arg0: i32, %arg1: i32, %arg2: i32, %arg3: memref<16x32xf32, #tpu.memory_space<vmem>>, %arg4: memref<32x32xf32, #tpu.memory_space<vmem>>, %arg5: memref<1x32xf32, #tpu.memory_space<vmem>>, %arg6: memref<16x32xf32, #tpu.memory_space<vmem>>, %arg7: memref<16x32xf32, #tpu.memory_space<vmem>>) attributes {dimension_semantics = [#tpu.dimension_semantics<parallel>, #tpu.dimension_semantics<parallel>, #tpu.dimension_semantics<arbitrary>], iteration_bounds = array<i64: 1, 1, 1>, scalar_prefetch = 0 : i64, scratch_operands = 1 : i64, tpu.core_type = #tpu.core_type<tc>, window_params = [{transform_indices = @transform_0, window_bounds = array<i64: 16, 32>}, {transform_indices = @transform_1, window_bounds = array<i64: 32, 32>}, {transform_indices = @transform_2, window_bounds = array<i64: 1, 32>}, {transform_indices = @transform_3, window_bounds = array<i64: 16, 32>}]} {
    %c0_i32 = arith.constant 0 : i32
    %0 = arith.cmpi eq, %arg2, %c0_i32 : i32
    %1 = arith.extui %0 : i1 to i32
    %c0_i32_0 = arith.constant 0 : i32
    %2 = arith.cmpi ne, %1, %c0_i32_0 : i32
    scf.if %2 {
      %cst_10 = arith.constant 0.000000e+00 : f32
      %12 = vector.broadcast %cst_10 : f32 to vector<16x32xf32>
      %c0_11 = arith.constant 0 : index
      %c0_12 = arith.constant 0 : index
      %13 = vector.load %arg7[%c0_11, %c0_12] : memref<16x32xf32, #tpu.memory_space<vmem>>, vector<16x32xf32>
      tpu.vector_store %arg7[%c0_11, %c0_12], %12 {strides = array<i32>} : memref<16x32xf32, #tpu.memory_space<vmem>>, vector<16x32xf32>,
    } else {
    }
    %c0 = arith.constant 0 : index
    %c0_1 = arith.constant 0 : index
    %3 = vector.load %arg7[%c0, %c0_1] : memref<16x32xf32, #tpu.memory_space<vmem>>, vector<16x32xf32>
    %c0_2 = arith.constant 0 : index
    %c0_3 = arith.constant 0 : index
    %4 = vector.load %arg3[%c0_2, %c0_3] : memref<16x32xf32, #tpu.memory_space<vmem>>, vector<16x32xf32>
    %c0_4 = arith.constant 0 : index
    %c0_5 = arith.constant 0 : index
    %5 = vector.load %arg4[%c0_4, %c0_5] : memref<32x32xf32, #tpu.memory_space<vmem>>, vector<32x32xf32>
    %cst = arith.constant dense<0.000000e+00> : vector<16x32xf32>
    %6 = tpu.matmul %4, %5, %cst {dimension_numbers = #tpu.dot_dimension_numbers<[1], [0], [0], [1], [0, 0, 1, 1], [], []>} : vector<16x32xf32>, vector<32x32xf32>, vector<16x32xf32> -> vector<16x32xf32>
    %7 = arith.addf %3, %6 : vector<16x32xf32>
    %c0_6 = arith.constant 0 : index
    %c0_7 = arith.constant 0 : index
    %8 = vector.load %arg7[%c0_6, %c0_7] : memref<16x32xf32, #tpu.memory_space<vmem>>, vector<16x32xf32>
    tpu.vector_store %arg7[%c0_6, %c0_7], %7 {strides = array<i32>} : memref<16x32xf32, #tpu.memory_space<vmem>>, vector<16x32xf32>,
    %c0_i32_8 = arith.constant 0 : i32
    %9 = arith.cmpi eq, %arg2, %c0_i32_8 : i32
    %10 = arith.extui %9 : i1 to i32
    %c0_i32_9 = arith.constant 0 : i32
    %11 = arith.cmpi ne, %10, %c0_i32_9 : i32
    scf.if %11 {
      %c0_10 = arith.constant 0 : index
      %c0_11 = arith.constant 0 : index
      %12 = vector.load %arg7[%c0_10, %c0_11] : memref<16x32xf32, #tpu.memory_space<vmem>>, vector<16x32xf32>
      %c0_12 = arith.constant 0 : index
      %c0_13 = arith.constant 0 : index
      %13 = vector.load %arg5[%c0_12, %c0_13] : memref<1x32xf32, #tpu.memory_space<vmem>>, vector<1x32xf32>
      %14 = vector.broadcast %13 : vector<1x32xf32> to vector<16x32xf32>
      %15 = arith.addf %12, %14 : vector<16x32xf32>
      %c0_14 = arith.constant 0 : index
      %c0_15 = arith.constant 0 : index
      %16 = vector.load %arg6[%c0_14, %c0_15] : memref<16x32xf32, #tpu.memory_space<vmem>>, vector<16x32xf32>
      tpu.vector_store %arg6[%c0_14, %c0_15], %15 {strides = array<i32>} : memref<16x32xf32, #tpu.memory_space<vmem>>, vector<16x32xf32>,
    } else {
    }
    return
  }
  func.func @transform_0(%arg0: i32, %arg1: i32, %arg2: i32) -> (i32, i32) {
    %c0_i32 = arith.constant 0 : i32
    return %arg0, %arg2 : i32, i32
  }
  func.func @transform_1(%arg0: i32, %arg1: i32, %arg2: i32) -> (i32, i32) {
    %c0_i32 = arith.constant 0 : i32
    return %arg2, %arg1 : i32, i32
  }
  func.func @transform_2(%arg0: i32, %arg1: i32, %arg2: i32) -> (i32, i32) {
    %c0_i32 = arith.constant 0 : i32
    %c0_i32_0 = arith.constant 0 : i32
    return %c0_i32, %arg1 : i32, i32
  }
  func.func @transform_3(%arg0: i32, %arg1: i32, %arg2: i32) -> (i32, i32) {
    %c0_i32 = arith.constant 0 : i32
    return %arg0, %arg1 : i32, i32
  }
}

</mosaic_0001>

<llo_original>
// kernel: tpu_custom_call.1
$region0: #{tpu_custom_call.1}
  #allocation0 [shape = 'u32[]', space=smem, size = 0x4, offset = 0x4, fixed_abs, tag = 'smem constant byte address 0x4 - core index']
  #allocation1 [shape = 'u32[144,128]{1,0:T(1,128)}', space=vmem, size = 0x12000, scoped, tag = 'internal scratch']
  #allocation2 [shape = 'f32[16,32]{1,0:T(8,128)}', space=vmem, size = 0x2000, scoped, tag = 'scratch operand']
  %s0 = inlined_call_operand.hbm [shape: f32[16,32], index: 0, kind: input, shape index: {}]
  %s1 = inlined_call_operand.hbm [shape: f32[32,32], index: 1, kind: input, shape index: {}]
  %s2 = inlined_call_operand.vmem [shape: f32[1,32], index: 2, kind: input, shape index: {}]
  %s3 = inlined_call_operand.hbm [shape: f32[16,32], index: 3, kind: output, shape index: {}]
  %s4 = sld [smem:[#allocation0]]
  $region38: #{tpu_custom_call.1} parent=0
    _
  %s6 = ssub.s32 1, %s4
  %s7 = scalar_select 0, %s6, %s4
  $region1: #{tpu_custom_call.1} parent=0
    #allocation3 [shape = 'u8[8192]{0}', space=vmem, size = 0x2000, scoped, tag = 'input window, operand 0, single buffered']
    #allocation4 [shape = 's32[1]{0}', space=sflag, size = 0x4, scoped, tag = 'scoped memory for tpu_custom_call.1']
    #allocation5 [shape = 's32[1]{0}', space=sflag, size = 0x4, scoped, tag = 'scoped memory for tpu_custom_call.1']
    #allocation6 [shape = 'u8[16384]{0}', space=vmem, size = 0x4000, scoped, tag = 'input window, operand 1, single buffered']
    #allocation7 [shape = 's32[1]{0}', space=sflag, size = 0x4, scoped, tag = 'scoped memory for tpu_custom_call.1']
    #allocation8 [shape = 'u8[8192]{0}', space=vmem, size = 0x2000, scoped, tag = 'output window, operand 0, single buffered']
    %8 = vsyncpa [#allocation4], 0
    %9 = vsyncpa [#allocation7], 0
    %10 = vsyncpa [#allocation5], 0
    // Predicated region
    $region2: #{tpu_custom_call.1} parent=1 // pred_check
      _
    $region3: #{tpu_custom_call.1} parent=1 // pred_check_branch
      %12 = sbr.rel (0) target = $region5
    $region4: #{tpu_custom_call.1} parent=1 // pred_region
      %s14 = ssub.s32 256, 256
      %15 = vsyncadd [#allocation4], %s14
      %s16 = sshll.u32 [#allocation3], 4
      %s17 = int_to_ptr.vmem [resolvable:$true] %s16
      %22 = dma.hbm_to_vmem [thread:$0]  %s0, 256, %s17, [#allocation4], 128, 128, 8
    $region5: #{tpu_custom_call.1} parent=1 // pred_fallthru
      _
    // Predicated region
    $region6: #{tpu_custom_call.1} parent=1 // pred_check
      _
    $region7: #{tpu_custom_call.1} parent=1 // pred_check_branch
      %24 = sbr.rel (0) target = $region9
    $region8: #{tpu_custom_call.1} parent=1 // pred_region
      %s26 = ssub.s32 512, 512
      %27 = vsyncadd [#allocation7], %s26
      %s28 = sshll.u32 [#allocation6], 4
      %s29 = int_to_ptr.vmem [resolvable:$true] %s28
      %34 = dma.hbm_to_vmem [thread:$0]  %s1, 512, %s29, [#allocation7], 128, 128, 8
    $region9: #{tpu_custom_call.1} parent=1 // pred_fallthru
      _
    // Predicated region
    $region10: #{tpu_custom_call.1} parent=1 // pred_check
      _
    $region11: #{tpu_custom_call.1} parent=1 // pred_check_branch
      %36 = sbr.rel (0) target = $region13
    $region12: #{tpu_custom_call.1} parent=1 // pred_region
      _
    $region13: #{tpu_custom_call.1} parent=1 // pred_fallthru
      _
    // Predicated region
    $region14: #{tpu_custom_call.1} parent=1 // pred_check
      _
    $region15: #{tpu_custom_call.1} parent=1 // pred_check_branch
      %38 = sbr.rel (0) target = $region17
    $region16: #{tpu_custom_call.1} parent=1 // pred_region
      %39 = dma.done [#allocation4], 256
    $region17: #{tpu_custom_call.1} parent=1 // pred_fallthru
      _
    // Predicated region
    $region18: #{tpu_custom_call.1} parent=1 // pred_check
      _
    $region19: #{tpu_custom_call.1} parent=1 // pred_check_branch
      %41 = sbr.rel (0) target = $region21
    $region20: #{tpu_custom_call.1} parent=1 // pred_region
      %42 = dma.done [#allocation7], 512
    $region21: #{tpu_custom_call.1} parent=1 // pred_fallthru
      _
    %p43 = scmp.eq.s32.totalorder 0, 0
    // Predicated region
    $region22: #{tpu_custom_call.1} parent=1 // pred_check
      %p44 = pneg %p43
    $region23: #{tpu_custom_call.1} parent=1 // pred_check_branch
      %46 = sbr.rel (%p44) target = $region25
    $region24: #{tpu_custom_call.1} parent=1 // pred_region
      %vm47 = vcmask 261120
      %48 = vst.msk [vmem:[#allocation2] sm:$0xff] %vm47, 0.0
      %49 = vst.msk [vmem:[#allocation2 + $0x8] sm:$0xff] %vm47, 0.0
    $region25: #{tpu_custom_call.1} parent=1 // pred_fallthru
      _
    %v50 = vld [vmem:[#allocation2] sm:$0xff]
    %v51 = vld [vmem:[#allocation2 + $0x8] sm:$0xff]
    %v52 = vld [vmem:[#allocation3] sm:$0xff]
    %v53 = vld [vmem:[#allocation3 + $0x8] sm:$0xff]
    %v54 = vld [vmem:[#allocation6] sm:$0xff]
    %v55 = vld [vmem:[#allocation6 + $0x8] sm:$0xff]
    %v56 = vld [vmem:[#allocation6 + $0x10] sm:$0xff]
    %v57 = vld [vmem:[#allocation6 + $0x18] sm:$0xff]
    %vm58 = vcmask 261120
    %v60 = vsel %vm58, %v52, 0
    %v63 = vsel %vm58, %v53, 0
    %65 = vmatprep.subr.mxu0 0.0
    %66 = vmatpush1.msra.mxu0 %v54
    %67 = vmatprep.subr.mxu0 0.0
    %68 = vmatpush1.msra.mxu0 %v55
    %69 = vmatprep.subr.mxu0 0.0
    %70 = vmatpush1.msra.mxu0 %v56
    %71 = vmatprep.subr.mxu0 0.0
    %72 = vmatpush1.msra.mxu0 %v57
    %73 = vmatprep.subr.mxu0 0.0
    %74 = vmatpush1.msra.mxu0 0.0
    %75 = vmatprep.subr.mxu0 0.0
    %76 = vmatpush1.msra.mxu0 0.0
    %77 = vmatprep.subr.mxu0 0.0
    %78 = vmatpush1.msra.mxu0 0.0
    %79 = vmatprep.subr.mxu0 0.0
    %80 = vmatpush1.msra.mxu0 0.0
    %81 = vmatprep.subr.mxu0 0.0
    %82 = vmatpush1.msra.mxu0 0.0
    %83 = vmatprep.subr.mxu0 0.0
    %84 = vmatpush1.msra.mxu0 0.0
    %85 = vmatprep.subr.mxu0 0.0
    %86 = vmatpush1.msra.mxu0 0.0
    %87 = vmatprep.subr.mxu0 0.0
    %88 = vmatpush1.msra.mxu0 0.0
    %89 = vmatprep.subr.mxu0 0.0
    %90 = vmatpush1.msra.mxu0 0.0
    %91 = vmatprep.subr.mxu0 0.0
    %92 = vmatpush1.msra.mxu0 0.0
    %93 = vmatprep.subr.mxu0 0.0
    %94 = vmatpush1.msra.mxu0 0.0
    %95 = vmatprep.subr.mxu0 0.0
    %96 = vmatpush1.msra.mxu0 0.0
    %97 = vmatprep.subr.mxu0 0.0
    %98 = vmatpush1.msra.mxu0 0.0
    %99 = vmatprep.subr.mxu0 0.0
    %100 = vmatpush1.msra.mxu0 0.0
    %101 = vmatprep.subr.mxu0 0.0
    %102 = vmatpush1.msra.mxu0 0.0
    %103 = vmatprep.subr.mxu0 0.0
    %104 = vmatpush1.msra.mxu0 0.0
    %105 = vmatprep.subr.mxu0 0.0
    %106 = vmatpush1.msra.mxu0 0.0
    %107 = vmatprep.subr.mxu0 0.0
    %108 = vmatpush1.msra.mxu0 0.0
    %109 = vmatprep.subr.mxu0 0.0
    %110 = vmatpush1.msra.mxu0 0.0
    %111 = vmatprep.subr.mxu0 0.0
    %112 = vmatpush1.msra.mxu0 0.0
    %113 = vmatprep.subr.mxu0 0.0
    %114 = vmatpush1.msra.mxu0 0.0
    %115 = vmatprep.subr.mxu0 0.0
    %116 = vmatpush1.msra.mxu0 0.0
    %117 = vmatprep.subr.mxu0 0.0
    %118 = vmatpush1.msra.mxu0 0.0
    %119 = vmatprep.subr.mxu0 0.0
    %120 = vmatpush1.msra.mxu0 0.0
    %121 = vmatprep.subr.mxu0 0.0
    %122 = vmatpush1.msra.mxu0 0.0
    %123 = vmatprep.subr.mxu0 0.0
    %124 = vmatpush1.msra.mxu0 0.0
    %125 = vmatprep.subr.mxu0 0.0
    %126 = vmatpush1.msra.mxu0 0.0
    %127 = vmatprep.subr.mxu0 0.0
    %128 = vmatpush1.msra.mxu0 0.0
    %129 = vmatprep.mubr.f32.mxu0 0.0
    %130 = vmatmul.mubr.f32.gmra.mrb[0].mxu0 %v60
    %v131 = vpop.f32.mrb[0].mxu0
    %v132 = vadd.f32 0.0, %v131
    %v133 = vpop.f32.mrb[0].mxu0
    %134 = vmatprep.mubr.f32.mxu0 0.0
    %135 = vmatmul.mubr.f32.gmra.mrb[0].mxu0 %v63
    %v136 = vpop.f32.mrb[0].mxu0
    %v137 = vadd.f32 0.0, %v136
    %v138 = vpop.f32.mrb[0].mxu0
    %139 = vdwg.mxu0
    %v140 = vadd.f32 %v50, %v132
    %v141 = vadd.f32 %v51, %v137
    %142 = vst.msk [vmem:[#allocation2] sm:$0xff] %vm58, %v140
    %143 = vst.msk [vmem:[#allocation2 + $0x8] sm:$0xff] %vm58, %v141
    // Predicated region
    $region26: #{tpu_custom_call.1} parent=1 // pred_check
      %p144 = pneg %p43
    $region27: #{tpu_custom_call.1} parent=1 // pred_check_branch
      %146 = sbr.rel (%p144) target = $region29
    $region28: #{tpu_custom_call.1} parent=1 // pred_region
      %v147 = vld [vmem:[#allocation2] sm:$0xff]
      %v148 = vld [vmem:[#allocation2 + $0x8] sm:$0xff]
      %v149 = vld [vmem:[%s2] sm:$0x1]
      %v151 = vlaneseq
      %v152 = vshrl.u32 %v151, 7
      %v153 = vsub.s32 0, %v152
      %v154 = vrot.slane %v149, %v153
      %v156 = vadd.f32 %v147, %v154
      %v157 = vadd.f32 %v148, %v154
      %158 = vst.msk [vmem:[#allocation8] sm:$0xff] %vm58, %v156
      %159 = vst.msk [vmem:[#allocation8 + $0x8] sm:$0xff] %vm58, %v157
    $region29: #{tpu_custom_call.1} parent=1 // pred_fallthru
      _
    // Predicated region
    $region30: #{tpu_custom_call.1} parent=1 // pred_check
      _
    $region31: #{tpu_custom_call.1} parent=1 // pred_check_branch
      %161 = sbr.rel (0) target = $region33
    $region32: #{tpu_custom_call.1} parent=1 // pred_region
      %s163 = ssub.s32 256, 256
      %164 = vsyncadd [#allocation5], %s163
      %s165 = sshll.u32 [#allocation8], 4
      %s166 = int_to_ptr.vmem [resolvable:$true] %s165
      %171 = dma.vmem_to_hbm [thread:$0]  %s166, 256, %s3, [#allocation5], 128, 128, 8
    $region33: #{tpu_custom_call.1} parent=1 // pred_fallthru
      _
    // Predicated region
    $region34: #{tpu_custom_call.1} parent=1 // pred_check
      _
    $region35: #{tpu_custom_call.1} parent=1 // pred_check_branch
      %173 = sbr.rel (0) target = $region37
    $region36: #{tpu_custom_call.1} parent=1 // pred_region
      %174 = dma.done [#allocation5], 256
    $region37: #{tpu_custom_call.1} parent=1 // pred_fallthru
      _
    %175 = vsyncpa [#allocation4], 1
    %176 = vsyncpa [#allocation7], 1
    %177 = vsyncpa [#allocation5], 1

</llo_original>
